<compile_context>
chip_gen: v6e
topology: v6e:2x2x1
jax: 0.10.0
libtpu: 0.0.40
codegen_flags: <defaults>
</compile_context>

<pallas_src>
import jax
import jax.numpy as jnp
from jax import lax
from jax.experimental import pallas as pl
from jax.experimental.pallas import tpu as pltpu

D_MODEL = 32
D_FF = 64
NUM_TYPES = 5
LANES = 128            # packed input lane width:  [ x | one-hot(type) | 0 ]
EPS = 1e-6


def type_ffn_kernel(p_ref, w1_ref, r_ref, b2_ref, w2_ref, o_ref):
    # p_ref: (tm, 128) f32, lanes [0:32)=x, [32:37)=one-hot(type), rest 0.
    p = p_ref[...]                                        # (tm, 128) f32
    x = p[:, :D_MODEL]                                    # residual / LN input

    # ---- LayerNorm stats (unbiased std, eps added to std — matches module) ----
    mean = jnp.sum(x, axis=-1, keepdims=True) * (1.0 / D_MODEL)
    cen = x - mean
    var = jnp.sum(cen * cen, axis=-1, keepdims=True) * (1.0 / (D_MODEL - 1))
    inv = pl.reciprocal(jnp.sqrt(var) + EPS, approx=True)          # EUP slot

    # Fused first-matmul operand: lanes [0:32) = (x-mean)*inv_std,
    # lanes [32:37) = one-hot(type) (drives b1', mask rows and b2 rows), rest 0.
    lane = lax.broadcasted_iota(jnp.int32, p.shape, 1)
    op1 = jnp.where(lane < D_MODEL, (p - mean) * inv, p).astype(jnp.bfloat16)

    # ---- Linear1 (LayerNorm affine + b1 folded into the weights) on the MXU ----
    h = jnp.dot(op1, w1_ref[...], preferred_element_type=jnp.float32)     # (tm, 320)
    # Type mask expanded on the MXU (one-hot lanes x block-ones rows), exact {0,1}.
    mask = jnp.dot(op1, r_ref[...], preferred_element_type=jnp.float32)   # (tm, 320)
    # ReLU + type-gather #1 (mask >= 0 so relu(h)*mask == relu(h*mask)).
    hm = jnp.maximum(h * mask, 0.0).astype(jnp.bfloat16)

    # ---- Linear2 over stacked per-type W2_t^T blocks (type-gather #2 fused) ----
    y = jnp.dot(hm, w2_ref[...], preferred_element_type=jnp.float32)      # (tm, 32)
    # Per-type output bias selected by the same one-hot lanes.
    b2 = jnp.dot(op1, b2_ref[...], preferred_element_type=jnp.float32)    # (tm, 32)

    out = y + b2 + x                                     # residual (dropout = identity)

    # ---- lane-dense store: pack the 4 sublane-quarters of (tm, 32) into 128 lanes ----
    q = out.shape[0] // 4
    for k in range(4):
        o_ref[:, k * D_MODEL:(k + 1) * D_MODEL] = (
            out[k * q:(k + 1) * q, :].astype(o_ref.dtype))


def positionwise_ffn(x, code_type5, params, *, tm=1024):
    """x: [B, L, D_MODEL] float, code_type5: [B, L] int in [0, NUM_TYPES)."""
    g, beta, w1, b1, w2, b2 = params
    B, L, d_model = x.shape
    assert d_model == D_MODEL
    M = B * L
    f32 = jnp.float32

    def round_up(a, b):
        return ((a + b - 1) // b) * b

    # Tile must be a multiple of 32 (out block is (tm/4, 128) -> tm/4 % 8 == 0).
    # Clamp for tiny inputs and guarantee grid_m >= 2 so v7x megacore can shard.
    tm_eff = max(32, min(round_up(tm, 32), round_up(M, 32)))
    grid_m = pl.cdiv(M, tm_eff)
    if grid_m < 2:
        tm_eff = max(32, round_up(pl.cdiv(M, 2), 32))
        grid_m = max(2, pl.cdiv(M, tm_eff))
    m_pad = grid_m * tm_eff

    # ---- packed lane-dense input slab: [ x | one-hot(type) | 0 ] per token row ----
    xf = x.reshape(M, D_MODEL).astype(f32)
    tf = code_type5.reshape(M).astype(jnp.int32)
    if m_pad != M:
        xf = jnp.pad(xf, ((0, m_pad - M), (0, 0)))
        tf = jnp.pad(tf, ((0, m_pad - M),))          # padded rows -> type 0 (benign)
    onehot = jax.nn.one_hot(tf, NUM_TYPES, dtype=f32)
    packed = jnp.concatenate(
        [xf, onehot, jnp.zeros((m_pad, LANES - D_MODEL - NUM_TYPES), f32)], axis=1)

    # ---- one-time parameter re-layouts (outside the hot loop) ----
    n_ff = NUM_TYPES * D_FF
    w1t = w1.astype(f32).T                                           # (32, 320)
    # Fold LayerNorm affine: (g*xn + beta) @ W1^T = xn @ (g[:,None]*W1^T) + (b1 + beta@W1^T)
    w1p = g.astype(f32)[:, None] * w1t
    b1p = b1.astype(f32) + beta.astype(f32) @ w1t                    # (320,)
    w1aug = jnp.zeros((LANES, n_ff), f32)
    w1aug = w1aug.at[:D_MODEL].set(w1p)
    w1aug = w1aug.at[D_MODEL:D_MODEL + NUM_TYPES].set(
        jnp.broadcast_to(b1p, (NUM_TYPES, n_ff)))
    w1aug = w1aug.astype(jnp.bfloat16)

    # One-hot(type) -> d_ff block mask, expanded on the MXU.
    rmat = jnp.repeat(jnp.eye(NUM_TYPES, dtype=f32), D_FF, axis=1)   # (5, 320)
    raug = jnp.zeros((LANES, n_ff), f32).at[D_MODEL:D_MODEL + NUM_TYPES].set(rmat)
    raug = raug.astype(jnp.bfloat16)

    # Per-type output bias rows, selected by the same one-hot lanes.
    b2aug = jnp.zeros((LANES, D_MODEL), f32).at[D_MODEL:D_MODEL + NUM_TYPES].set(
        b2.astype(f32).reshape(NUM_TYPES, D_MODEL))
    b2aug = b2aug.astype(jnp.bfloat16)

    # Stacked per-type W2_t^T blocks: rows [t*d_ff:(t+1)*d_ff] = W2_t^T.
    w2s = jnp.transpose(w2.astype(f32).reshape(NUM_TYPES, D_MODEL, D_FF),
                        (0, 2, 1)).reshape(n_ff, D_MODEL).astype(jnp.bfloat16)

    out_dense = pl.pallas_call(
        type_ffn_kernel,
        out_shape=jax.ShapeDtypeStruct((m_pad // 4, LANES), f32),
        grid_spec=pltpu.PrefetchScalarGridSpec(
            num_scalar_prefetch=0,
            grid=(grid_m,),
            in_specs=[
                pl.BlockSpec((tm_eff, LANES), lambda i: (i, 0)),      # packed tokens
                pl.BlockSpec((LANES, n_ff), lambda i: (0, 0)),        # W1' (+ b1' rows)
                pl.BlockSpec((LANES, n_ff), lambda i: (0, 0)),        # mask expansion
                pl.BlockSpec((LANES, D_MODEL), lambda i: (0, 0)),     # b2 rows
                pl.BlockSpec((n_ff, D_MODEL), lambda i: (0, 0)),      # stacked W2^T
            ],
            out_specs=pl.BlockSpec((tm_eff // 4, LANES), lambda i: (i, 0)),
        ),
        compiler_params=pltpu.CompilerParams(
            dimension_semantics=("parallel",),
            vmem_limit_bytes=32 * 1024 * 1024),
    )(packed, w1aug, raug, b2aug, w2s)

    # Un-pack the lane-dense output: within tile i, lane-group k of local row r'
    # holds token i*tm_eff + k*(tm_eff/4) + r'.
    q = tm_eff // 4
    out = out_dense.reshape(grid_m, q, 4, D_MODEL)
    out = jnp.transpose(out, (0, 2, 1, 3)).reshape(m_pad, D_MODEL)
    return out[:M].reshape(B, L, D_MODEL).astype(x.dtype)


def reference_forward(x, code_type5, params):
    """Pure-JAX replica of the PyTorch forward (eval mode) for validation."""
    g, beta, w1, b1, w2, b2 = params
    mean = jnp.mean(x, axis=-1, keepdims=True)
    centered = x - mean
    var = jnp.sum(centered**2, axis=-1, keepdims=True) / (x.shape[-1] - 1)
    ln = g * centered / (jnp.sqrt(var) + EPS) + beta
    inter = jnp.maximum(jnp.einsum('bld,fd->blf', ln, w1) + b1, 0.0)
    idx_ff = jnp.arange(D_FF)[None, None, :] + D_FF * code_type5[:, :, None]
    inter_type = jnp.take_along_axis(inter, idx_ff, axis=2)
    out = jnp.einsum('blf,df->bld', inter_type, w2) + b2
    idx_dm = jnp.arange(D_MODEL)[None, None, :] + D_MODEL * code_type5[:, :, None]
    out_type = jnp.take_along_axis(out, idx_dm, axis=2)
    return out_type + x


if __name__ == "__main__":
    key = jax.random.PRNGKey(0)
    k_x, k_t, k_g, k_b, k_w1, k_b1, k_w2, k_b2 = jax.random.split(key, 8)

    B, L = 2, 8
    x = jax.random.normal(k_x, (B, L, D_MODEL), jnp.float32)
    code_type5 = jax.random.randint(k_t, (B, L), 0, NUM_TYPES, jnp.int32)

    # Non-trivial LayerNorm affine so the fold-into-W1 path is actually exercised.
    g = 1.0 + 0.1 * jax.random.normal(k_g, (D_MODEL,), jnp.float32)     # a_2
    beta = 0.1 * jax.random.normal(k_b, (D_MODEL,), jnp.float32)        # b_2
    w1 = 0.05 * jax.random.normal(k_w1, (NUM_TYPES * D_FF, D_MODEL), jnp.float32)
    b1 = 0.05 * jax.random.normal(k_b1, (NUM_TYPES * D_FF,), jnp.float32)
    w2 = 0.05 * jax.random.normal(k_w2, (NUM_TYPES * D_MODEL, D_FF), jnp.float32)
    b2 = 0.05 * jax.random.normal(k_b2, (NUM_TYPES * D_MODEL,), jnp.float32)
    params = (g, beta, w1, b1, w2, b2)

    out = positionwise_ffn(x, code_type5, params)
    out = jax.block_until_ready(out)

    ref = reference_forward(x, code_type5, params)
    assert out.shape == (B, L, D_MODEL)
    assert bool(jnp.all(jnp.isfinite(out)))
    assert bool(jnp.allclose(out, ref, atol=1e-2, rtol=1e-2)), "mismatch vs reference"

    print("KERNEL_OK")
</pallas_src>

<mosaic_0001>
module attributes {stable_mosaic.version = 11 : i64} {
  func.func @type_ffn_kernel(%arg0: i32, %arg1: memref<32x128xf32, #tpu.memory_space<vmem>>, %arg2: memref<128x320xbf16, #tpu.memory_space<vmem>>, %arg3: memref<128x320xbf16, #tpu.memory_space<vmem>>, %arg4: memref<128x32xbf16, #tpu.memory_space<vmem>>, %arg5: memref<320x32xbf16, #tpu.memory_space<vmem>>, %arg6: memref<8x128xf32, #tpu.memory_space<vmem>>) attributes {dimension_semantics = [#tpu.dimension_semantics<parallel>], iteration_bounds = array<i64: 2>, scalar_prefetch = 0 : i64, scratch_operands = 0 : i64, tpu.core_type = #tpu.core_type<tc>, window_params = [{transform_indices = @transform_0, window_bounds = array<i64: 32, 128>}, {pipeline_mode = #tpu.pipeline_mode<synchronous>, transform_indices = @transform_1, window_bounds = array<i64: 128, 320>}, {pipeline_mode = #tpu.pipeline_mode<synchronous>, transform_indices = @transform_2, window_bounds = array<i64: 128, 320>}, {pipeline_mode = #tpu.pipeline_mode<synchronous>, transform_indices = @transform_3, window_bounds = array<i64: 128, 32>}, {pipeline_mode = #tpu.pipeline_mode<synchronous>, transform_indices = @transform_4, window_bounds = array<i64: 320, 32>}, {transform_indices = @transform_5, window_bounds = array<i64: 8, 128>}]} {
    %c0 = arith.constant 0 : index
    %c0_0 = arith.constant 0 : index
    %0 = vector.load %arg1[%c0, %c0_0] : memref<32x128xf32, #tpu.memory_space<vmem>>, vector<32x128xf32>
    %1 = vector.extract_strided_slice %0 {offsets = [0, 0], sizes = [32, 32], strides = [1, 1]} : vector<32x128xf32> to vector<32x32xf32>
    %cst = arith.constant dense<0.000000e+00> : vector<32xf32>
    %2 = vector.multi_reduction <add>, %1, %cst [1] : vector<32x32xf32> to vector<32xf32>
    %3 = vector.shape_cast %2 : vector<32xf32> to vector<32x1xf32>
    %cst_1 = arith.constant 3.125000e-02 : f32
    %4 = vector.broadcast %cst_1 : f32 to vector<32x1xf32>
    %5 = arith.mulf %3, %4 : vector<32x1xf32>
    %6 = vector.broadcast %5 : vector<32x1xf32> to vector<32x32xf32>
    %7 = arith.subf %1, %6 : vector<32x32xf32>
    %8 = arith.mulf %7, %7 : vector<32x32xf32>
    %cst_2 = arith.constant dense<0.000000e+00> : vector<32xf32>
    %9 = vector.multi_reduction <add>, %8, %cst_2 [1] : vector<32x32xf32> to vector<32xf32>
    %10 = vector.shape_cast %9 : vector<32xf32> to vector<32x1xf32>
    %cst_3 = arith.constant 0.0322580636 : f32
    %11 = vector.broadcast %cst_3 : f32 to vector<32x1xf32>
    %12 = arith.mulf %10, %11 : vector<32x1xf32>
    %13 = math.sqrt %12 : vector<32x1xf32>
    %cst_4 = arith.constant 9.99999997E-7 : f32
    %14 = vector.broadcast %cst_4 : f32 to vector<32x1xf32>
    %15 = arith.addf %13, %14 : vector<32x1xf32>
    %16 = tpu.reciprocal %15 {approx = true} : vector<32x1xf32> -> vector<32x1xf32>
    %17 = tpu.iota {dimensions = array<i32: 1>} : vector<32x128xi32>
    %c32_i32 = arith.constant 32 : i32
    %18 = vector.broadcast %c32_i32 : i32 to vector<32x128xi32>
    %19 = arith.cmpi slt, %17, %18 : vector<32x128xi32>
    %20 = vector.broadcast %5 : vector<32x1xf32> to vector<32x128xf32>
    %21 = arith.subf %0, %20 : vector<32x128xf32>
    %22 = vector.broadcast %16 : vector<32x1xf32> to vector<32x128xf32>
    %23 = arith.mulf %21, %22 : vector<32x128xf32>
    %24 = arith.select %19, %23, %0 : vector<32x128xi1>, vector<32x128xf32>
    %25 = arith.truncf %24 : vector<32x128xf32> to vector<32x128xbf16>
    %c0_5 = arith.constant 0 : index
    %c0_6 = arith.constant 0 : index
    %26 = vector.load %arg2[%c0_5, %c0_6] : memref<128x320xbf16, #tpu.memory_space<vmem>>, vector<128x320xbf16>
    %cst_7 = arith.constant dense<0.000000e+00> : vector<32x320xf32>
    %27 = tpu.matmul %25, %26, %cst_7 {dimension_numbers = #tpu.dot_dimension_numbers<[1], [0], [0], [1], [0, 0, 1, 1], [], []>} : vector<32x128xbf16>, vector<128x320xbf16>, vector<32x320xf32> -> vector<32x320xf32>
    %c0_8 = arith.constant 0 : index
    %c0_9 = arith.constant 0 : index
    %28 = vector.load %arg3[%c0_8, %c0_9] : memref<128x320xbf16, #tpu.memory_space<vmem>>, vector<128x320xbf16>
    %cst_10 = arith.constant dense<0.000000e+00> : vector<32x320xf32>
    %29 = tpu.matmul %25, %28, %cst_10 {dimension_numbers = #tpu.dot_dimension_numbers<[1], [0], [0], [1], [0, 0, 1, 1], [], []>} : vector<32x128xbf16>, vector<128x320xbf16>, vector<32x320xf32> -> vector<32x320xf32>
    %30 = arith.mulf %27, %29 : vector<32x320xf32>
    %cst_11 = arith.constant 0.000000e+00 : f32
    %31 = vector.broadcast %cst_11 : f32 to vector<32x320xf32>
    %32 = arith.maximumf %30, %31 : vector<32x320xf32>
    %33 = arith.truncf %32 : vector<32x320xf32> to vector<32x320xbf16>
    %c0_12 = arith.constant 0 : index
    %c0_13 = arith.constant 0 : index
    %34 = vector.load %arg5[%c0_12, %c0_13] : memref<320x32xbf16, #tpu.memory_space<vmem>>, vector<320x32xbf16>
    %cst_14 = arith.constant dense<0.000000e+00> : vector<32x32xf32>
    %35 = tpu.matmul %33, %34, %cst_14 {dimension_numbers = #tpu.dot_dimension_numbers<[1], [0], [0], [1], [0, 0, 1, 1], [], []>} : vector<32x320xbf16>, vector<320x32xbf16>, vector<32x32xf32> -> vector<32x32xf32>
    %c0_15 = arith.constant 0 : index
    %c0_16 = arith.constant 0 : index
    %36 = vector.load %arg4[%c0_15, %c0_16] : memref<128x32xbf16, #tpu.memory_space<vmem>>, vector<128x32xbf16>
    %cst_17 = arith.constant dense<0.000000e+00> : vector<32x32xf32>
    %37 = tpu.matmul %25, %36, %cst_17 {dimension_numbers = #tpu.dot_dimension_numbers<[1], [0], [0], [1], [0, 0, 1, 1], [], []>} : vector<32x128xbf16>, vector<128x32xbf16>, vector<32x32xf32> -> vector<32x32xf32>
    %38 = arith.addf %35, %37 : vector<32x32xf32>
    %39 = arith.addf %38, %1 : vector<32x32xf32>
    %40 = vector.extract_strided_slice %39 {offsets = [0, 0], sizes = [8, 32], strides = [1, 1]} : vector<32x32xf32> to vector<8x32xf32>
    %c0_18 = arith.constant 0 : index
    %c0_19 = arith.constant 0 : index
    %41 = vector.load %arg6[%c0_18, %c0_19] : memref<8x128xf32, #tpu.memory_space<vmem>>, vector<8x32xf32>
    tpu.vector_store %arg6[%c0_18, %c0_19], %40 {strides = array<i32>} : memref<8x128xf32, #tpu.memory_space<vmem>>, vector<8x32xf32>,
    %42 = vector.extract_strided_slice %39 {offsets = [8, 0], sizes = [8, 32], strides = [1, 1]} : vector<32x32xf32> to vector<8x32xf32>
    %c0_20 = arith.constant 0 : index
    %c32 = arith.constant 32 : index
    %43 = vector.load %arg6[%c0_20, %c32] : memref<8x128xf32, #tpu.memory_space<vmem>>, vector<8x32xf32>
    tpu.vector_store %arg6[%c0_20, %c32], %42 {strides = array<i32>} : memref<8x128xf32, #tpu.memory_space<vmem>>, vector<8x32xf32>,
    %44 = vector.extract_strided_slice %39 {offsets = [16, 0], sizes = [8, 32], strides = [1, 1]} : vector<32x32xf32> to vector<8x32xf32>
    %c0_21 = arith.constant 0 : index
    %c64 = arith.constant 64 : index
    %45 = vector.load %arg6[%c0_21, %c64] : memref<8x128xf32, #tpu.memory_space<vmem>>, vector<8x32xf32>
    tpu.vector_store %arg6[%c0_21, %c64], %44 {strides = array<i32>} : memref<8x128xf32, #tpu.memory_space<vmem>>, vector<8x32xf32>,
    %46 = vector.extract_strided_slice %39 {offsets = [24, 0], sizes = [8, 32], strides = [1, 1]} : vector<32x32xf32> to vector<8x32xf32>
    %c0_22 = arith.constant 0 : index
    %c96 = arith.constant 96 : index
    %47 = vector.load %arg6[%c0_22, %c96] : memref<8x128xf32, #tpu.memory_space<vmem>>, vector<8x32xf32>
    tpu.vector_store %arg6[%c0_22, %c96], %46 {strides = array<i32>} : memref<8x128xf32, #tpu.memory_space<vmem>>, vector<8x32xf32>,
    return
  }
  func.func @transform_0(%arg0: i32) -> (i32, i32) {
    %c0_i32 = arith.constant 0 : i32
    %c0_i32_0 = arith.constant 0 : i32
    return %arg0, %c0_i32 : i32, i32
  }
  func.func @transform_1(%arg0: i32) -> (i32, i32) {
    %c0_i32 = arith.constant 0 : i32
    %c0_i32_0 = arith.constant 0 : i32
    %c0_i32_1 = arith.constant 0 : i32
    return %c0_i32, %c0_i32_0 : i32, i32
  }
  func.func @transform_2(%arg0: i32) -> (i32, i32) {
    %c0_i32 = arith.constant 0 : i32
    %c0_i32_0 = arith.constant 0 : i32
    %c0_i32_1 = arith.constant 0 : i32
    return %c0_i32, %c0_i32_0 : i32, i32
  }
  func.func @transform_3(%arg0: i32) -> (i32, i32) {
    %c0_i32 = arith.constant 0 : i32
    %c0_i32_0 = arith.constant 0 : i32
    %c0_i32_1 = arith.constant 0 : i32
    return %c0_i32, %c0_i32_0 : i32, i32
  }
  func.func @transform_4(%arg0: i32) -> (i32, i32) {
    %c0_i32 = arith.constant 0 : i32
    %c0_i32_0 = arith.constant 0 : i32
    %c0_i32_1 = arith.constant 0 : i32
    return %c0_i32, %c0_i32_0 : i32, i32
  }
  func.func @transform_5(%arg0: i32) -> (i32, i32) {
    %c0_i32 = arith.constant 0 : i32
    %c0_i32_0 = arith.constant 0 : i32
    return %arg0, %c0_i32 : i32, i32
  }
}

</mosaic_0001>

<llo_original>
// kernel: tpu_custom_call.1
$region0: #{tpu_custom_call.1}
  #allocation0 [shape = 'u32[]', space=smem, size = 0x4, offset = 0x4, fixed_abs, tag = 'smem constant byte address 0x4 - core index']
  #allocation1 [shape = 'u32[144,128]{1,0:T(1,128)}', space=vmem, size = 0x12000, scoped, tag = 'internal scratch']
  %s0 = inlined_call_operand.vmem [shape: f32[64,128], index: 0, kind: input, shape index: {}]
  %s1 = inlined_call_operand.vmem [shape: bf16[128,320], index: 1, kind: input, shape index: {}]
  %s2 = inlined_call_operand.vmem [shape: bf16[128,320], index: 2, kind: input, shape index: {}]
  %s3 = inlined_call_operand.vmem [shape: bf16[128,32], index: 3, kind: input, shape index: {}]
  %s4 = inlined_call_operand.vmem [shape: bf16[320,32], index: 4, kind: input, shape index: {}]
  %s5 = inlined_call_operand.hbm [shape: f32[16,128], index: 5, kind: output, shape index: {}]
  %s6 = sld [smem:[#allocation0]]
  $region53: #{tpu_custom_call.1} parent=0
    _
  %s8 = ssub.s32 1, %s6
  %s9 = scalar_select 0, %s8, %s6
  $region1: #{tpu_custom_call.1} parent=0
    #allocation2 [shape = 'u8[8192]{0}', space=vmem, size = 0x2000, scoped, tag = 'output window, operand 0']
    #allocation3 [shape = 's32[2]{0}', space=sflag, size = 0x8, scoped, tag = 'scoped memory for tpu_custom_call.1']
    %10 = vsyncpa [#allocation3], 0
    %s11 = scalar_lea.sflag [#allocation3], 1
    %12 = vsyncpa %s11, 0
    loop: start=0, step=1, limit=4
    $region2: #{tpu_custom_call.1} parent=1 // loop_pre_header
      _
    $region3: #{tpu_custom_call.1} parent=1 // loop_header
      %s14 = sphi 0, %s18
      %p15 = scmp.ge.s32.totalorder %s14, 4
      %s24 = sphi 0, %s26
      %s27 = sphi 0, %s24
      %s28 = sphi 0, %s27
      %s44 = sphi 0, %s28
      %s48 = sphi 0, %s48
      %s50 = sphi 0, %s48
      %s51 = sphi 0, %s50
      %s65 = sphi 0, %s51
      %s69 = sphi 0, %s69
      %s71 = sphi 0, %s69
      %s72 = sphi 0, %s71
      %s86 = sphi 0, %s72
      %s90 = sphi 0, %s90
      %s92 = sphi 0, %s90
      %s93 = sphi 0, %s92
      %s107 = sphi 0, %s93
      %s111 = sphi 0, %s111
      %s113 = sphi 0, %s111
      %s114 = sphi 0, %s113
      %s128 = sphi 0, %s114
      %s134 = sphi 0, %s136
      %s137 = sphi 0, %s134
      %s138 = sphi 0, %s137
      %s154 = sphi 0, %s138
    $region4: #{tpu_custom_call.1} parent=1 // loop_header_branch
      %17 = sbr.rel (%p15) target = $region8
    $region5: #{tpu_custom_call.1} parent=1 // loop_body
      %s19 = ssub.s32 %s14, 1
      %s20 = ssub.s32 %s14, 2
      %s21 = sadd.s32 %s14, 1
      %s22 = ssub.s32 %s14, %s21
      %p23 = scmp.eq.s32.totalorder %s22, 0
      %s25 = sadd.s32 %s24, 1
      %s26 = scalar_select %p23, %s24, %s25
      %p29 = pneg %p23
      %p30 = scmp.eq.s32.totalorder %s14, 1
      %p31 = por %p29, %p30
      %p32 = scmp.ne.s32.totalorder %s24, %s27
      %p33 = scmp.eq.s32.totalorder %s14, 0
      %p34 = por %p32, %p33
      %p35 = scmp.ne.s32.totalorder %s24, %s27
      %p36 = scmp.eq.s32.totalorder %s19, 1
      %p37 = por %p35, %p36
      %p38 = scmp.ne.s32.totalorder %s27, %s28
      %p39 = scmp.eq.s32.totalorder %s19, 0
      %p40 = por %p38, %p39
      %p41 = scmp.ne.s32.totalorder %s27, %s28
      %p42 = scmp.eq.s32.totalorder %s20, 1
      %p43 = por %p41, %p42
      %p45 = scmp.ne.s32.totalorder %s28, %s44
      %p46 = scmp.eq.s32.totalorder %s20, 0
      %p47 = por %p45, %p46
      %s49 = sadd.s32 %s48, 1
      %p52 = scmp.eq.s32.totalorder %s14, 1
      %p53 = scmp.ne.s32.totalorder %s48, %s50
      %p54 = scmp.eq.s32.totalorder %s14, 0
      %p55 = por %p53, %p54
      %p56 = scmp.ne.s32.totalorder %s48, %s50
      %p57 = scmp.eq.s32.totalorder %s19, 1
      %p58 = por %p56, %p57
      %p59 = scmp.ne.s32.totalorder %s50, %s51
      %p60 = scmp.eq.s32.totalorder %s19, 0
      %p61 = por %p59, %p60
      %p62 = scmp.ne.s32.totalorder %s50, %s51
      %p63 = scmp.eq.s32.totalorder %s20, 1
      %p64 = por %p62, %p63
      %p66 = scmp.ne.s32.totalorder %s51, %s65
      %p67 = scmp.eq.s32.totalorder %s20, 0
      %p68 = por %p66, %p67
      %s70 = sadd.s32 %s69, 1
      %p73 = scmp.eq.s32.totalorder %s14, 1
      %p74 = scmp.ne.s32.totalorder %s69, %s71
      %p75 = scmp.eq.s32.totalorder %s14, 0
      %p76 = por %p74, %p75
      %p77 = scmp.ne.s32.totalorder %s69, %s71
      %p78 = scmp.eq.s32.totalorder %s19, 1
      %p79 = por %p77, %p78
      %p80 = scmp.ne.s32.totalorder %s71, %s72
      %p81 = scmp.eq.s32.totalorder %s19, 0
      %p82 = por %p80, %p81
      %p83 = scmp.ne.s32.totalorder %s71, %s72
      %p84 = scmp.eq.s32.totalorder %s20, 1
      %p85 = por %p83, %p84
      %p87 = scmp.ne.s32.totalorder %s72, %s86
      %p88 = scmp.eq.s32.totalorder %s20, 0
      %p89 = por %p87, %p88
      %s91 = sadd.s32 %s90, 1
      %p94 = scmp.eq.s32.totalorder %s14, 1
      %p95 = scmp.ne.s32.totalorder %s90, %s92
      %p96 = scmp.eq.s32.totalorder %s14, 0
      %p97 = por %p95, %p96
      %p98 = scmp.ne.s32.totalorder %s90, %s92
      %p99 = scmp.eq.s32.totalorder %s19, 1
      %p100 = por %p98, %p99
      %p101 = scmp.ne.s32.totalorder %s92, %s93
      %p102 = scmp.eq.s32.totalorder %s19, 0
      %p103 = por %p101, %p102
      %p104 = scmp.ne.s32.totalorder %s92, %s93
      %p105 = scmp.eq.s32.totalorder %s20, 1
      %p106 = por %p104, %p105
      %p108 = scmp.ne.s32.totalorder %s93, %s107
      %p109 = scmp.eq.s32.totalorder %s20, 0
      %p110 = por %p108, %p109
      %s112 = sadd.s32 %s111, 1
      %p115 = scmp.eq.s32.totalorder %s14, 1
      %p116 = scmp.ne.s32.totalorder %s111, %s113
      %p117 = scmp.eq.s32.totalorder %s14, 0
      %p118 = por %p116, %p117
      %p119 = scmp.ne.s32.totalorder %s111, %s113
      %p120 = scmp.eq.s32.totalorder %s19, 1
      %p121 = por %p119, %p120
      %p122 = scmp.ne.s32.totalorder %s113, %s114
      %p123 = scmp.eq.s32.totalorder %s19, 0
      %p124 = por %p122, %p123
      %p125 = scmp.ne.s32.totalorder %s113, %s114
      %p126 = scmp.eq.s32.totalorder %s20, 1
      %p127 = por %p125, %p126
      %p129 = scmp.ne.s32.totalorder %s114, %s128
      %p130 = scmp.eq.s32.totalorder %s20, 0
      %p131 = por %p129, %p130
      %s132 = ssub.s32 %s14, %s21
      %p133 = scmp.eq.s32.totalorder %s132, 0
      %s135 = sadd.s32 %s134, 1
      %s136 = scalar_select %p133, %s134, %s135
      %p139 = pneg %p133
      %p140 = scmp.eq.s32.totalorder %s14, 1
      %p141 = por %p139, %p140
      %p142 = scmp.ne.s32.totalorder %s134, %s137
      %p143 = scmp.eq.s32.totalorder %s14, 0
      %p144 = por %p142, %p143
      %p145 = scmp.ne.s32.totalorder %s134, %s137
      %p146 = scmp.eq.s32.totalorder %s19, 1
      %p147 = por %p145, %p146
      %p148 = scmp.ne.s32.totalorder %s137, %s138
      %p149 = scmp.eq.s32.totalorder %s19, 0
      %p150 = por %p148, %p149
      %p151 = scmp.ne.s32.totalorder %s137, %s138
      %p152 = scmp.eq.s32.totalorder %s20, 1
      %p153 = por %p151, %p152
      %p155 = scmp.ne.s32.totalorder %s138, %s154
      %p156 = scmp.eq.s32.totalorder %s20, 0
      %p157 = por %p155, %p156
      %p158 = scmp.le.s32.totalorder 1, %s14
      %p159 = scmp.lt.s32.totalorder %s14, 3
      %p160 = pnand %p158, %p159
      %p161 = pneg %p160
      // Predicated region
      $region9: #{tpu_custom_call.1} parent=5 // pred_check
        _
      $region10: #{tpu_custom_call.1} parent=5 // pred_check_branch
        %163 = sbr.rel (%p160) target = $region12
      $region11: #{tpu_custom_call.1} parent=5 // pred_region
        %s164 = ssub.s32 %s14, 1
        // Predicated region
        $region13: #{tpu_custom_call.1} parent=11 // pred_check
          %p165 = pneg %p61
        $region14: #{tpu_custom_call.1} parent=11 // pred_check_branch
          %167 = sbr.rel (%p165) target = $region16
        $region15: #{tpu_custom_call.1} parent=11 // pred_region
          _
        $region16: #{tpu_custom_call.1} parent=11 // pred_fallthru
          _
        // Predicated region
        $region17: #{tpu_custom_call.1} parent=11 // pred_check
          %p168 = pneg %p82
        $region18: #{tpu_custom_call.1} parent=11 // pred_check_branch
          %170 = sbr.rel (%p168) target = $region20
        $region19: #{tpu_custom_call.1} parent=11 // pred_region
          _
        $region20: #{tpu_custom_call.1} parent=11 // pred_fallthru
          _
        // Predicated region
        $region21: #{tpu_custom_call.1} parent=11 // pred_check
          %p171 = pneg %p103
        $region22: #{tpu_custom_call.1} parent=11 // pred_check_branch
          %173 = sbr.rel (%p171) target = $region24
        $region23: #{tpu_custom_call.1} parent=11 // pred_region
          _
        $region24: #{tpu_custom_call.1} parent=11 // pred_fallthru
          _
        // Predicated region
        $region25: #{tpu_custom_call.1} parent=11 // pred_check
          %p174 = pneg %p124
        $region26: #{tpu_custom_call.1} parent=11 // pred_check_branch
          %176 = sbr.rel (%p174) target = $region28
        $region27: #{tpu_custom_call.1} parent=11 // pred_region
          _
        $region28: #{tpu_custom_call.1} parent=11 // pred_fallthru
          _
      $region12: #{tpu_custom_call.1} parent=5 // pred_fallthru
        _
      %p177 = scmp.lt.s32.totalorder %s14, 2
      // Predicated region
      $region29: #{tpu_custom_call.1} parent=5 // pred_check
        %p178 = pneg %p177
      $region30: #{tpu_custom_call.1} parent=5 // pred_check_branch
        %180 = sbr.rel (%p178) target = $region32
      $region31: #{tpu_custom_call.1} parent=5 // pred_region
        // Predicated region
        $region33: #{tpu_custom_call.1} parent=31 // pred_check
          %p181 = pneg %p34
        $region34: #{tpu_custom_call.1} parent=31 // pred_check_branch
          %183 = sbr.rel (%p181) target = $region36
        $region35: #{tpu_custom_call.1} parent=31 // pred_region
          %s184 = smul.u32 4, %s14
          %p185 = scmp.lt.s32.totalorder %s184, 7
          %s186 = scalar_select %p185, %s184, 7
          %s187 = smul.addr %s186, 8
          %s188 = scalar_lea.vmem %s0, %s187
          %s189 = smul.u32 4, %s14
        $region36: #{tpu_custom_call.1} parent=31 // pred_fallthru
          _
      $region32: #{tpu_custom_call.1} parent=5 // pred_fallthru
        _
      %p190 = scmp.le.s32.totalorder 1, %s14
      %p191 = scmp.lt.s32.totalorder %s14, 3
      %p192 = pnand %p190, %p191
      %p193 = pneg %p192
      // Predicated region
      $region37: #{tpu_custom_call.1} parent=5 // pred_check
        _
      $region38: #{tpu_custom_call.1} parent=5 // pred_check_branch
        %195 = sbr.rel (%p192) target = $region40
      $region39: #{tpu_custom_call.1} parent=5 // pred_region
        %s196 = ssub.s32 %s14, 1
        %s197 = smul.u32 4, %s19
        %p198 = scmp.lt.s32.totalorder %s197, 7
        %s199 = scalar_select %p198, %s197, 7
        %s200 = smul.addr %s199, 8
        %s201 = scalar_lea.vmem %s0, %s200
        %p202 = pneg %p40
        %p203 = pneg %p37
        %p204 = pneg %p61
        %p205 = pneg %p58
        %p206 = pneg %p82
        %p207 = pneg %p79
        %p208 = pneg %p103
        %p209 = pneg %p100
        %p210 = pneg %p124
        %p211 = pneg %p121
        %p212 = pneg %p150
        %p213 = pneg %p147
        %s214 = sand.u32 %s137, 1
        %s215 = scalar_lea.sflag [#allocation3], %s214
        %s216 = sand.u32 %s137, 1
        %s217 = smul.addr %s216, 8
        %s218 = scalar_lea.vmem [#allocation2], %s217
        %s219 = smul.u32 4, %s19
        %p220 = scmp.lt.s32.totalorder %s219, 7
        %s221 = scalar_select %p220, %s219, 7
        %s222 = smul.addr %s221, 8
        %s223 = scalar_lea.vmem %s0, %s222
        %s224 = smul.u32 4, %s19
        %v226 = vld [vmem:[%s223] sm:$0xff]
        %v227 = vld [vmem:[%s223 + $0x8] sm:$0xff]
        %v228 = vld [vmem:[%s223 + $0x10] sm:$0xff]
        %v229 = vld [vmem:[%s223 + $0x18] sm:$0xff]
        %vm230 = vcmask 261120
        %v231 = vsel %vm230, %v226, 0.0
        %232 = vadd.xlane.f32.xlu0 %v231
        %v233 = vpop.xlane.xlu0 %232
        %v234 = vsel %vm230, %v227, 0.0
        %235 = vadd.xlane.f32.xlu0 %v234
        %v236 = vpop.xlane.xlu0 %235
        %v237 = vsel %vm230, %v228, 0.0
        %238 = vadd.xlane.f32.xlu0 %v237
        %v239 = vpop.xlane.xlu0 %238
        %v240 = vsel %vm230, %v229, 0.0
        %241 = vadd.xlane.f32.xlu0 %v240
        %v242 = vpop.xlane.xlu0 %241
        %v243 = vmul.f32 %v233, 0.03125
        %v244 = vmul.f32 %v236, 0.03125
        %v245 = vmul.f32 %v239, 0.03125
        %v246 = vmul.f32 %v242, 0.03125
        %v247 = vsub.f32 %v226, %v243
        %v248 = vsub.f32 %v227, %v244
        %v249 = vsub.f32 %v228, %v245
        %v250 = vsub.f32 %v229, %v246
        %v251 = vmul.f32 %v247, %v247
        %v252 = vmul.f32 %v248, %v248
        %v253 = vmul.f32 %v249, %v249
        %v254 = vmul.f32 %v250, %v250
        %v255 = vsel %vm230, %v251, 0.0
        %256 = vadd.xlane.f32.xlu0 %v255
        %v257 = vpop.xlane.xlu0 %256
        %v258 = vsel %vm230, %v252, 0.0
        %259 = vadd.xlane.f32.xlu0 %v258
        %v260 = vpop.xlane.xlu0 %259
        %v261 = vsel %vm230, %v253, 0.0
        %262 = vadd.xlane.f32.xlu0 %v261
        %v263 = vpop.xlane.xlu0 %262
        %v264 = vsel %vm230, %v254, 0.0
        %265 = vadd.xlane.f32.xlu0 %v264
        %v266 = vpop.xlane.xlu0 %265
        %v267 = vmul.f32 %v257, 0.032258064
        %v268 = vmul.f32 %v260, 0.032258064
        %v269 = vmul.f32 %v263, 0.032258064
        %v270 = vmul.f32 %v266, 0.032258064
        %v271 = vrsqrt.pop %v267
        %v272 = vmul.f32 %v267, %v271
        %vm273 = vcmp.eq.f32.partialorder %v267, inf
        %v274 = vsel %vm273, %v267, %v272
        %vm275 = vcmp.eq.f32.partialorder %v267, 0.0
        %v276 = vand.u32 %v267, 2147483648
        %v277 = vsel %vm275, %v276, %v274
        %v278 = vrsqrt.pop %v268
        %v279 = vmul.f32 %v268, %v278
        %vm280 = vcmp.eq.f32.partialorder %v268, inf
        %v281 = vsel %vm280, %v268, %v279
        %vm282 = vcmp.eq.f32.partialorder %v268, 0.0
        %v283 = vand.u32 %v268, 2147483648
        %v284 = vsel %vm282, %v283, %v281
        %v285 = vrsqrt.pop %v269
        %v286 = vmul.f32 %v269, %v285
        %vm287 = vcmp.eq.f32.partialorder %v269, inf
        %v288 = vsel %vm287, %v269, %v286
        %vm289 = vcmp.eq.f32.partialorder %v269, 0.0
        %v290 = vand.u32 %v269, 2147483648
        %v291 = vsel %vm289, %v290, %v288
        %v292 = vrsqrt.pop %v270
        %v293 = vmul.f32 %v270, %v292
        %vm294 = vcmp.eq.f32.partialorder %v270, inf
        %v295 = vsel %vm294, %v270, %v293
        %vm296 = vcmp.eq.f32.partialorder %v270, 0.0
        %v297 = vand.u32 %v270, 2147483648
        %v298 = vsel %vm296, %v297, %v295
        %v299 = vadd.f32 %v277, 1e-06
        %v300 = vadd.f32 %v284, 1e-06
        %v301 = vadd.f32 %v291, 1e-06
        %v302 = vadd.f32 %v298, 1e-06
        %v303 = vrcp.pop %v299
        %v304 = vrcp.pop %v300
        %v305 = vrcp.pop %v301
        %v306 = vrcp.pop %v302
        %v307 = vlaneseq
        %v308 = vand.u32 %v307, 127
        %vm309 = vcmp.lt.s32.totalorder %v308, 32
        %v310 = vmul.f32 %v247, %v303
        %v311 = vmul.f32 %v248, %v304
        %v312 = vmul.f32 %v249, %v305
        %v313 = vmul.f32 %v250, %v306
        %v314 = vsel %vm309, %v310, %v226
        %v315 = vsel %vm309, %v311, %v227
        %v316 = vsel %vm309, %v312, %v228
        %v317 = vsel %vm309, %v313, %v229
        %v318 = vpack.c.bf16 %v315, %v314
        %v319 = vpack.c.bf16 %v317, %v316
        %v320 = vld [vmem:[%s1] sm:$0xff]
        %v321 = vld [vmem:[%s1 + $0x8] sm:$0xf]
        %v322 = vld [vmem:[%s1 + $0xc] sm:$0xff]
        %v323 = vld [vmem:[%s1 + $0x14] sm:$0xf]
        %v324 = vld [vmem:[%s1 + $0x18] sm:$0xff]
        %v325 = vld [vmem:[%s1 + $0x20] sm:$0xf]
        %v326 = vld [vmem:[%s1 + $0x24] sm:$0xff]
        %v327 = vld [vmem:[%s1 + $0x2c] sm:$0xf]
        %v328 = vld [vmem:[%s1 + $0x30] sm:$0xff]
        %v329 = vld [vmem:[%s1 + $0x38] sm:$0xf]
        %v330 = vld [vmem:[%s1 + $0x3c] sm:$0xff]
        %v331 = vld [vmem:[%s1 + $0x44] sm:$0xf]
        %v332 = vld [vmem:[%s1 + $0x48] sm:$0xff]
        %v333 = vld [vmem:[%s1 + $0x50] sm:$0xf]
        %v334 = vld [vmem:[%s1 + $0x54] sm:$0xff]
        %v335 = vld [vmem:[%s1 + $0x5c] sm:$0xf]
        %v336 = vld [vmem:[%s1 + $0x60] sm:$0xff]
        %v337 = vld [vmem:[%s1 + $0x68] sm:$0xf]
        %v338 = vld [vmem:[%s1 + $0x6c] sm:$0xff]
        %v339 = vld [vmem:[%s1 + $0x74] sm:$0xf]
        %v340 = vld [vmem:[%s1 + $0x78] sm:$0xff]
        %v341 = vld [vmem:[%s1 + $0x80] sm:$0xf]
        %v342 = vld [vmem:[%s1 + $0x84] sm:$0xff]
        %v343 = vld [vmem:[%s1 + $0x8c] sm:$0xf]
        %v344 = vld [vmem:[%s1 + $0x90] sm:$0xff]
        %v345 = vld [vmem:[%s1 + $0x98] sm:$0xf]
        %v346 = vld [vmem:[%s1 + $0x9c] sm:$0xff]
        %v347 = vld [vmem:[%s1 + $0xa4] sm:$0xf]
        %v348 = vld [vmem:[%s1 + $0xa8] sm:$0xff]
        %v349 = vld [vmem:[%s1 + $0xb0] sm:$0xf]
        %v350 = vld [vmem:[%s1 + $0xb4] sm:$0xff]
        %v351 = vld [vmem:[%s1 + $0xbc] sm:$0xf]
        %v384 = vunpack.c.l.b16 %v320
        %v385 = vunpack.c.h.b16 %v320
        %v386 = vunpack.c.l.b16 %v321
        %v387 = vunpack.c.l.b16 %v322
        %v388 = vunpack.c.h.b16 %v322
        %v389 = vunpack.c.l.b16 %v323
        %v390 = vunpack.c.l.b16 %v324
        %v391 = vunpack.c.h.b16 %v324
        %v392 = vunpack.c.l.b16 %v325
        %v393 = vunpack.c.l.b16 %v326
        %v394 = vunpack.c.h.b16 %v326
        %v395 = vunpack.c.l.b16 %v327
        %v396 = vunpack.c.l.b16 %v328
        %v397 = vunpack.c.h.b16 %v328
        %v398 = vunpack.c.l.b16 %v329
        %v399 = vunpack.c.l.b16 %v330
        %v400 = vunpack.c.h.b16 %v330
        %v401 = vunpack.c.l.b16 %v331
        %v402 = vunpack.c.l.b16 %v332
        %v403 = vunpack.c.h.b16 %v332
        %v404 = vunpack.c.l.b16 %v333
        %v405 = vunpack.c.l.b16 %v334
        %v406 = vunpack.c.h.b16 %v334
        %v407 = vunpack.c.l.b16 %v335
        %v408 = vunpack.c.l.b16 %v336
        %v409 = vunpack.c.h.b16 %v336
        %v410 = vunpack.c.l.b16 %v337
        %v411 = vunpack.c.l.b16 %v338
        %v412 = vunpack.c.h.b16 %v338
        %v413 = vunpack.c.l.b16 %v339
        %v414 = vunpack.c.l.b16 %v340
        %v415 = vunpack.c.h.b16 %v340
        %v416 = vunpack.c.l.b16 %v341
        %v417 = vunpack.c.l.b16 %v342
        %v418 = vunpack.c.h.b16 %v342
        %v419 = vunpack.c.l.b16 %v343
        %v420 = vunpack.c.l.b16 %v344
        %v421 = vunpack.c.h.b16 %v344
        %v422 = vunpack.c.l.b16 %v345
        %v423 = vunpack.c.l.b16 %v346
        %v424 = vunpack.c.h.b16 %v346
        %v425 = vunpack.c.l.b16 %v347
        %v426 = vunpack.c.l.b16 %v348
        %v427 = vunpack.c.h.b16 %v348
        %v428 = vunpack.c.l.b16 %v349
        %v429 = vunpack.c.l.b16 %v350
        %v430 = vunpack.c.h.b16 %v350
        %v431 = vunpack.c.l.b16 %v351
        %v432 = vpack.c.b16 %v387, %v384
        %v433 = vpack.c.b16 %v388, %v385
        %v434 = vpack.c.b16 %v389, %v386
        %v435 = vpack.c.b16 %v393, %v390
        %v436 = vpack.c.b16 %v394, %v391
        %v437 = vpack.c.b16 %v395, %v392
        %v438 = vpack.c.b16 %v399, %v396
        %v439 = vpack.c.b16 %v400, %v397
        %v440 = vpack.c.b16 %v401, %v398
        %v441 = vpack.c.b16 %v405, %v402
        %v442 = vpack.c.b16 %v406, %v403
        %v443 = vpack.c.b16 %v407, %v404
        %v444 = vpack.c.b16 %v411, %v408
        %v445 = vpack.c.b16 %v412, %v409
        %v446 = vpack.c.b16 %v413, %v410
        %v447 = vpack.c.b16 %v417, %v414
        %v448 = vpack.c.b16 %v418, %v415
        %v449 = vpack.c.b16 %v419, %v416
        %v450 = vpack.c.b16 %v423, %v420
        %v451 = vpack.c.b16 %v424, %v421
        %v452 = vpack.c.b16 %v425, %v422
        %v453 = vpack.c.b16 %v429, %v426
        %v454 = vpack.c.b16 %v430, %v427
        %v455 = vpack.c.b16 %v431, %v428
        %480 = vmatprep.subr.bf16.mxu0 %v454
        %481 = vmatpush1.bf16.msra.mxu0 %v453
        %482 = vmatprep.subr.bf16.mxu0 %v451
        %483 = vmatpush1.bf16.msra.mxu0 %v450
        %484 = vmatprep.subr.bf16.mxu0 %v448
        %485 = vmatpush1.bf16.msra.mxu0 %v447
        %486 = vmatprep.subr.bf16.mxu0 %v445
        %487 = vmatpush1.bf16.msra.mxu0 %v444
        %488 = vmatprep.subr.bf16.mxu0 %v442
        %489 = vmatpush1.bf16.msra.mxu0 %v441
        %490 = vmatprep.subr.bf16.mxu0 %v439
        %491 = vmatpush1.bf16.msra.mxu0 %v438
        %492 = vmatprep.subr.bf16.mxu0 %v436
        %493 = vmatpush1.bf16.msra.mxu0 %v435
        %494 = vmatprep.subr.bf16.mxu0 %v433
        %495 = vmatpush1.bf16.msra.mxu0 %v432
        %496 = vmatprep.subr.bf16.mxu0 0
        %497 = vmatpush2.bf16.msra.mxu0 0
        %498 = vmatprep.subr.bf16.mxu0 0
        %499 = vmatpush2.bf16.msra.mxu0 0
        %500 = vmatprep.subr.bf16.mxu0 0
        %501 = vmatpush2.bf16.msra.mxu0 0
        %502 = vmatprep.subr.bf16.mxu0 0
        %503 = vmatpush2.bf16.msra.mxu0 0
        %504 = vmatprep.subr.bf16.mxu0 0
        %505 = vmatpush2.bf16.msra.mxu0 0
        %506 = vmatprep.subr.bf16.mxu0 0
        %507 = vmatpush2.bf16.msra.mxu0 0
        %508 = vmatprep.subr.bf16.mxu0 0
        %509 = vmatpush2.bf16.msra.mxu0 0
        %510 = vmatprep.subr.bf16.mxu0 0
        %511 = vmatpush2.bf16.msra.mxu0 0
        %512 = vmatprep.mubr.bf16.mxu0 0
        %513 = vmatmul.mubr.bf16.gmra.mxu0 %v318
        %v514 = vpop.f32.mrf.mxu0
        %v515 = vadd.f32 0.0, %v514
        %v516 = vpop.f32.mrf.mxu0
        %v517 = vadd.f32 0.0, %v516
        %v518 = vpop.f32.mrf.mxu0
        %v519 = vadd.f32 0.0, %v518
        %v520 = vpop.f32.mrf.mxu0
        %v521 = vadd.f32 0.0, %v520
        %522 = vmatprep.mubr.bf16.mxu0 0
        %523 = vmatmul.mubr.bf16.gmra.mxu0 %v319
        %v524 = vpop.f32.mrf.mxu0
        %v525 = vadd.f32 0.0, %v524
        %v526 = vpop.f32.mrf.mxu0
        %v527 = vadd.f32 0.0, %v526
        %v528 = vpop.f32.mrf.mxu0
        %v529 = vadd.f32 0.0, %v528
        %v530 = vpop.f32.mrf.mxu0
        %v531 = vadd.f32 0.0, %v530
        %532 = vdwg.mxu0
        %533 = vmatprep.subr.bf16.mxu0 0
        %534 = vmatpush1.bf16.msra.mxu0 %v455
        %535 = vmatprep.subr.bf16.mxu0 0
        %536 = vmatpush1.bf16.msra.mxu0 %v452
        %537 = vmatprep.subr.bf16.mxu0 0
        %538 = vmatpush1.bf16.msra.mxu0 %v449
        %539 = vmatprep.subr.bf16.mxu0 0
        %540 = vmatpush1.bf16.msra.mxu0 %v446
        %541 = vmatprep.subr.bf16.mxu0 0
        %542 = vmatpush1.bf16.msra.mxu0 %v443
        %543 = vmatprep.subr.bf16.mxu0 0
        %544 = vmatpush1.bf16.msra.mxu0 %v440
        %545 = vmatprep.subr.bf16.mxu0 0
        %546 = vmatpush1.bf16.msra.mxu0 %v437
        %547 = vmatprep.subr.bf16.mxu0 0
        %548 = vmatpush1.bf16.msra.mxu0 %v434
        %549 = vmatprep.subr.bf16.mxu0 0
        %550 = vmatpush2.bf16.msra.mxu0 0
        %551 = vmatprep.subr.bf16.mxu0 0
        %552 = vmatpush2.bf16.msra.mxu0 0
        %553 = vmatprep.subr.bf16.mxu0 0
        %554 = vmatpush2.bf16.msra.mxu0 0
        %555 = vmatprep.subr.bf16.mxu0 0
        %556 = vmatpush2.bf16.msra.mxu0 0
        %557 = vmatprep.subr.bf16.mxu0 0
        %558 = vmatpush2.bf16.msra.mxu0 0
        %559 = vmatprep.subr.bf16.mxu0 0
        %560 = vmatpush2.bf16.msra.mxu0 0
        %561 = vmatprep.subr.bf16.mxu0 0
        %562 = vmatpush2.bf16.msra.mxu0 0
        %563 = vmatprep.subr.bf16.mxu0 0
        %564 = vmatpush2.bf16.msra.mxu0 0
        %565 = vmatprep.mubr.bf16.mxu0 0
        %566 = vmatmul.mubr.bf16.gmra.mxu0 %v318
        %v567 = vpop.f32.mrf.mxu0
        %v568 = vadd.f32 0.0, %v567
        %v569 = vpop.f32.mrf.mxu0
        %v570 = vpop.f32.mrf.mxu0
        %v571 = vadd.f32 0.0, %v570
        %v572 = vpop.f32.mrf.mxu0
        %573 = vmatprep.mubr.bf16.mxu0 0
        %574 = vmatmul.mubr.bf16.gmra.mxu0 %v319
        %v575 = vpop.f32.mrf.mxu0
        %v576 = vadd.f32 0.0, %v575
        %v577 = vpop.f32.mrf.mxu0
        %v578 = vpop.f32.mrf.mxu0
        %v579 = vadd.f32 0.0, %v578
        %v580 = vpop.f32.mrf.mxu0
        %581 = vdwg.mxu0
        %v582 = vld [vmem:[%s2] sm:$0xff]
        %v583 = vld [vmem:[%s2 + $0x8] sm:$0xf]
        %v584 = vld [vmem:[%s2 + $0xc] sm:$0xff]
        %v585 = vld [vmem:[%s2 + $0x14] sm:$0xf]
        %v586 = vld [vmem:[%s2 + $0x18] sm:$0xff]
        %v587 = vld [vmem:[%s2 + $0x20] sm:$0xf]
        %v588 = vld [vmem:[%s2 + $0x24] sm:$0xff]
        %v589 = vld [vmem:[%s2 + $0x2c] sm:$0xf]
        %v590 = vld [vmem:[%s2 + $0x30] sm:$0xff]
        %v591 = vld [vmem:[%s2 + $0x38] sm:$0xf]
        %v592 = vld [vmem:[%s2 + $0x3c] sm:$0xff]
        %v593 = vld [vmem:[%s2 + $0x44] sm:$0xf]
        %v594 = vld [vmem:[%s2 + $0x48] sm:$0xff]
        %v595 = vld [vmem:[%s2 + $0x50] sm:$0xf]
        %v596 = vld [vmem:[%s2 + $0x54] sm:$0xff]
        %v597 = vld [vmem:[%s2 + $0x5c] sm:$0xf]
        %v598 = vld [vmem:[%s2 + $0x60] sm:$0xff]
        %v599 = vld [vmem:[%s2 + $0x68] sm:$0xf]
        %v600 = vld [vmem:[%s2 + $0x6c] sm:$0xff]
        %v601 = vld [vmem:[%s2 + $0x74] sm:$0xf]
        %v602 = vld [vmem:[%s2 + $0x78] sm:$0xff]
        %v603 = vld [vmem:[%s2 + $0x80] sm:$0xf]
        %v604 = vld [vmem:[%s2 + $0x84] sm:$0xff]
        %v605 = vld [vmem:[%s2 + $0x8c] sm:$0xf]
        %v606 = vld [vmem:[%s2 + $0x90] sm:$0xff]
        %v607 = vld [vmem:[%s2 + $0x98] sm:$0xf]
        %v608 = vld [vmem:[%s2 + $0x9c] sm:$0xff]
        %v609 = vld [vmem:[%s2 + $0xa4] sm:$0xf]
        %v610 = vld [vmem:[%s2 + $0xa8] sm:$0xff]
        %v611 = vld [vmem:[%s2 + $0xb0] sm:$0xf]
        %v612 = vld [vmem:[%s2 + $0xb4] sm:$0xff]
        %v613 = vld [vmem:[%s2 + $0xbc] sm:$0xf]
        %v646 = vunpack.c.l.b16 %v582
        %v647 = vunpack.c.h.b16 %v582
        %v648 = vunpack.c.l.b16 %v583
        %v649 = vunpack.c.l.b16 %v584
        %v650 = vunpack.c.h.b16 %v584
        %v651 = vunpack.c.l.b16 %v585
        %v652 = vunpack.c.l.b16 %v586
        %v653 = vunpack.c.h.b16 %v586
        %v654 = vunpack.c.l.b16 %v587
        %v655 = vunpack.c.l.b16 %v588
        %v656 = vunpack.c.h.b16 %v588
        %v657 = vunpack.c.l.b16 %v589
        %v658 = vunpack.c.l.b16 %v590
        %v659 = vunpack.c.h.b16 %v590
        %v660 = vunpack.c.l.b16 %v591
        %v661 = vunpack.c.l.b16 %v592
        %v662 = vunpack.c.h.b16 %v592
        %v663 = vunpack.c.l.b16 %v593
        %v664 = vunpack.c.l.b16 %v594
        %v665 = vunpack.c.h.b16 %v594
        %v666 = vunpack.c.l.b16 %v595
        %v667 = vunpack.c.l.b16 %v596
        %v668 = vunpack.c.h.b16 %v596
        %v669 = vunpack.c.l.b16 %v597
        %v670 = vunpack.c.l.b16 %v598
        %v671 = vunpack.c.h.b16 %v598
        %v672 = vunpack.c.l.b16 %v599
        %v673 = vunpack.c.l.b16 %v600
        %v674 = vunpack.c.h.b16 %v600
        %v675 = vunpack.c.l.b16 %v601
        %v676 = vunpack.c.l.b16 %v602
        %v677 = vunpack.c.h.b16 %v602
        %v678 = vunpack.c.l.b16 %v603
        %v679 = vunpack.c.l.b16 %v604
        %v680 = vunpack.c.h.b16 %v604
        %v681 = vunpack.c.l.b16 %v605
        %v682 = vunpack.c.l.b16 %v606
        %v683 = vunpack.c.h.b16 %v606
        %v684 = vunpack.c.l.b16 %v607
        %v685 = vunpack.c.l.b16 %v608
        %v686 = vunpack.c.h.b16 %v608
        %v687 = vunpack.c.l.b16 %v609
        %v688 = vunpack.c.l.b16 %v610
        %v689 = vunpack.c.h.b16 %v610
        %v690 = vunpack.c.l.b16 %v611
        %v691 = vunpack.c.l.b16 %v612
        %v692 = vunpack.c.h.b16 %v612
        %v693 = vunpack.c.l.b16 %v613
        %v694 = vpack.c.b16 %v649, %v646
        %v695 = vpack.c.b16 %v650, %v647
        %v696 = vpack.c.b16 %v651, %v648
        %v697 = vpack.c.b16 %v655, %v652
        %v698 = vpack.c.b16 %v656, %v653
        %v699 = vpack.c.b16 %v657, %v654
        %v700 = vpack.c.b16 %v661, %v658
        %v701 = vpack.c.b16 %v662, %v659
        %v702 = vpack.c.b16 %v663, %v660
        %v703 = vpack.c.b16 %v667, %v664
        %v704 = vpack.c.b16 %v668, %v665
        %v705 = vpack.c.b16 %v669, %v666
        %v706 = vpack.c.b16 %v673, %v670
        %v707 = vpack.c.b16 %v674, %v671
        %v708 = vpack.c.b16 %v675, %v672
        %v709 = vpack.c.b16 %v679, %v676
        %v710 = vpack.c.b16 %v680, %v677
        %v711 = vpack.c.b16 %v681, %v678
        %v712 = vpack.c.b16 %v685, %v682
        %v713 = vpack.c.b16 %v686, %v683
        %v714 = vpack.c.b16 %v687, %v684
        %v715 = vpack.c.b16 %v691, %v688
        %v716 = vpack.c.b16 %v692, %v689
        %v717 = vpack.c.b16 %v693, %v690
        %742 = vmatprep.subr.bf16.mxu0 %v716
        %743 = vmatpush1.bf16.msra.mxu0 %v715
        %744 = vmatprep.subr.bf16.mxu0 %v713
        %745 = vmatpush1.bf16.msra.mxu0 %v712
        %746 = vmatprep.subr.bf16.mxu0 %v710
        %747 = vmatpush1.bf16.msra.mxu0 %v709
        %748 = vmatprep.subr.bf16.mxu0 %v707
        %749 = vmatpush1.bf16.msra.mxu0 %v706
        %750 = vmatprep.subr.bf16.mxu0 %v704
        %751 = vmatpush1.bf16.msra.mxu0 %v703
        %752 = vmatprep.subr.bf16.mxu0 %v701
        %753 = vmatpush1.bf16.msra.mxu0 %v700
        %754 = vmatprep.subr.bf16.mxu0 %v698
        %755 = vmatpush1.bf16.msra.mxu0 %v697
        %756 = vmatprep.subr.bf16.mxu0 %v695
        %757 = vmatpush1.bf16.msra.mxu0 %v694
        %758 = vmatprep.subr.bf16.mxu0 0
        %759 = vmatpush2.bf16.msra.mxu0 0
        %760 = vmatprep.subr.bf16.mxu0 0
        %761 = vmatpush2.bf16.msra.mxu0 0
        %762 = vmatprep.subr.bf16.mxu0 0
        %763 = vmatpush2.bf16.msra.mxu0 0
        %764 = vmatprep.subr.bf16.mxu0 0
        %765 = vmatpush2.bf16.msra.mxu0 0
        %766 = vmatprep.subr.bf16.mxu0 0
        %767 = vmatpush2.bf16.msra.mxu0 0
        %768 = vmatprep.subr.bf16.mxu0 0
        %769 = vmatpush2.bf16.msra.mxu0 0
        %770 = vmatprep.subr.bf16.mxu0 0
        %771 = vmatpush2.bf16.msra.mxu0 0
        %772 = vmatprep.subr.bf16.mxu0 0
        %773 = vmatpush2.bf16.msra.mxu0 0
        %774 = vmatprep.mubr.bf16.mxu0 0
        %775 = vmatmul.mubr.bf16.gmra.mxu0 %v318
        %v776 = vpop.f32.mrf.mxu0
        %v777 = vadd.f32 0.0, %v776
        %v778 = vpop.f32.mrf.mxu0
        %v779 = vadd.f32 0.0, %v778
        %v780 = vpop.f32.mrf.mxu0
        %v781 = vadd.f32 0.0, %v780
        %v782 = vpop.f32.mrf.mxu0
        %v783 = vadd.f32 0.0, %v782
        %784 = vmatprep.mubr.bf16.mxu0 0
        %785 = vmatmul.mubr.bf16.gmra.mxu0 %v319
        %v786 = vpop.f32.mrf.mxu0
        %v787 = vadd.f32 0.0, %v786
        %v788 = vpop.f32.mrf.mxu0
        %v789 = vadd.f32 0.0, %v788
        %v790 = vpop.f32.mrf.mxu0
        %v791 = vadd.f32 0.0, %v790
        %v792 = vpop.f32.mrf.mxu0
        %v793 = vadd.f32 0.0, %v792
        %794 = vdwg.mxu0
        %795 = vmatprep.subr.bf16.mxu0 0
        %796 = vmatpush1.bf16.msra.mxu0 %v717
        %797 = vmatprep.subr.bf16.mxu0 0
        %798 = vmatpush1.bf16.msra.mxu0 %v714
        %799 = vmatprep.subr.bf16.mxu0 0
        %800 = vmatpush1.bf16.msra.mxu0 %v711
        %801 = vmatprep.subr.bf16.mxu0 0
        %802 = vmatpush1.bf16.msra.mxu0 %v708
        %803 = vmatprep.subr.bf16.mxu0 0
        %804 = vmatpush1.bf16.msra.mxu0 %v705
        %805 = vmatprep.subr.bf16.mxu0 0
        %806 = vmatpush1.bf16.msra.mxu0 %v702
        %807 = vmatprep.subr.bf16.mxu0 0
        %808 = vmatpush1.bf16.msra.mxu0 %v699
        %809 = vmatprep.subr.bf16.mxu0 0
        %810 = vmatpush1.bf16.msra.mxu0 %v696
        %811 = vmatprep.subr.bf16.mxu0 0
        %812 = vmatpush2.bf16.msra.mxu0 0
        %813 = vmatprep.subr.bf16.mxu0 0
        %814 = vmatpush2.bf16.msra.mxu0 0
        %815 = vmatprep.subr.bf16.mxu0 0
        %816 = vmatpush2.bf16.msra.mxu0 0
        %817 = vmatprep.subr.bf16.mxu0 0
        %818 = vmatpush2.bf16.msra.mxu0 0
        %819 = vmatprep.subr.bf16.mxu0 0
        %820 = vmatpush2.bf16.msra.mxu0 0
        %821 = vmatprep.subr.bf16.mxu0 0
        %822 = vmatpush2.bf16.msra.mxu0 0
        %823 = vmatprep.subr.bf16.mxu0 0
        %824 = vmatpush2.bf16.msra.mxu0 0
        %825 = vmatprep.subr.bf16.mxu0 0
        %826 = vmatpush2.bf16.msra.mxu0 0
        %827 = vmatprep.mubr.bf16.mxu0 0
        %828 = vmatmul.mubr.bf16.gmra.mxu0 %v318
        %v829 = vpop.f32.mrf.mxu0
        %v830 = vadd.f32 0.0, %v829
        %v831 = vpop.f32.mrf.mxu0
        %v832 = vpop.f32.mrf.mxu0
        %v833 = vadd.f32 0.0, %v832
        %v834 = vpop.f32.mrf.mxu0
        %835 = vmatprep.mubr.bf16.mxu0 0
        %836 = vmatmul.mubr.bf16.gmra.mxu0 %v319
        %v837 = vpop.f32.mrf.mxu0
        %v838 = vadd.f32 0.0, %v837
        %v839 = vpop.f32.mrf.mxu0
        %v840 = vpop.f32.mrf.mxu0
        %v841 = vadd.f32 0.0, %v840
        %v842 = vpop.f32.mrf.mxu0
        %843 = vdwg.mxu0
        %v844 = vmul.f32 %v515, %v777
        %v845 = vmul.f32 %v517, %v779
        %v846 = vmul.f32 %v568, %v830
        %v847 = vmul.f32 %v519, %v781
        %v848 = vmul.f32 %v521, %v783
        %v849 = vmul.f32 %v571, %v833
        %v850 = vmul.f32 %v525, %v787
        %v851 = vmul.f32 %v527, %v789
        %v852 = vmul.f32 %v576, %v838
        %v853 = vmul.f32 %v529, %v791
        %v854 = vmul.f32 %v531, %v793
        %v855 = vmul.f32 %v579, %v841
        %v856 = vmax.f32 %v844, 0.0
        %v857 = vmax.f32 %v845, 0.0
        %v858 = vmax.f32 %v846, 0.0
        %v859 = vmax.f32 %v847, 0.0
        %v860 = vmax.f32 %v848, 0.0
        %v861 = vmax.f32 %v849, 0.0
        %v862 = vmax.f32 %v850, 0.0
        %v863 = vmax.f32 %v851, 0.0
        %v864 = vmax.f32 %v852, 0.0
        %v865 = vmax.f32 %v853, 0.0
        %v866 = vmax.f32 %v854, 0.0
        %v867 = vmax.f32 %v855, 0.0
        %v868 = vpack.c.bf16 %v859, %v856
        %v869 = vpack.c.bf16 %v860, %v857
        %v870 = vpack.c.bf16 %v861, %v858
        %v871 = vpack.c.bf16 %v865, %v862
        %v872 = vpack.c.bf16 %v866, %v863
        %v873 = vpack.c.bf16 %v867, %v864
        %v874 = vld [vmem:[%s4] sm:$0xf]
        %v875 = vld [vmem:[%s4 + $0x4] sm:$0xf]
        %v876 = vld [vmem:[%s4 + $0x8] sm:$0xf]
        %v877 = vld [vmem:[%s4 + $0xc] sm:$0xf]
        %v878 = vld [vmem:[%s4 + $0x10] sm:$0xf]
        %v879 = vld [vmem:[%s4 + $0x14] sm:$0xf]
        %v880 = vld [vmem:[%s4 + $0x18] sm:$0xf]
        %v881 = vld [vmem:[%s4 + $0x1c] sm:$0xf]
        %v882 = vld [vmem:[%s4 + $0x20] sm:$0xf]
        %v883 = vld [vmem:[%s4 + $0x24] sm:$0xf]
        %v884 = vld [vmem:[%s4 + $0x28] sm:$0xf]
        %v885 = vld [vmem:[%s4 + $0x2c] sm:$0xf]
        %v886 = vld [vmem:[%s4 + $0x30] sm:$0xf]
        %v887 = vld [vmem:[%s4 + $0x34] sm:$0xf]
        %v888 = vld [vmem:[%s4 + $0x38] sm:$0xf]
        %v889 = vld [vmem:[%s4 + $0x3c] sm:$0xf]
        %v890 = vld [vmem:[%s4 + $0x40] sm:$0xf]
        %v891 = vld [vmem:[%s4 + $0x44] sm:$0xf]
        %v892 = vld [vmem:[%s4 + $0x48] sm:$0xf]
        %v893 = vld [vmem:[%s4 + $0x4c] sm:$0xf]
        %v894 = vld [vmem:[%s4 + $0x50] sm:$0xf]
        %v895 = vld [vmem:[%s4 + $0x54] sm:$0xf]
        %v896 = vld [vmem:[%s4 + $0x58] sm:$0xf]
        %v897 = vld [vmem:[%s4 + $0x5c] sm:$0xf]
        %v898 = vld [vmem:[%s4 + $0x60] sm:$0xf]
        %v899 = vld [vmem:[%s4 + $0x64] sm:$0xf]
        %v900 = vld [vmem:[%s4 + $0x68] sm:$0xf]
        %v901 = vld [vmem:[%s4 + $0x6c] sm:$0xf]
        %v902 = vld [vmem:[%s4 + $0x70] sm:$0xf]
        %v903 = vld [vmem:[%s4 + $0x74] sm:$0xf]
        %v904 = vld [vmem:[%s4 + $0x78] sm:$0xf]
        %v905 = vld [vmem:[%s4 + $0x7c] sm:$0xf]
        %v906 = vld [vmem:[%s4 + $0x80] sm:$0xf]
        %v907 = vld [vmem:[%s4 + $0x84] sm:$0xf]
        %v908 = vld [vmem:[%s4 + $0x88] sm:$0xf]
        %v909 = vld [vmem:[%s4 + $0x8c] sm:$0xf]
        %v910 = vld [vmem:[%s4 + $0x90] sm:$0xf]
        %v911 = vld [vmem:[%s4 + $0x94] sm:$0xf]
        %v912 = vld [vmem:[%s4 + $0x98] sm:$0xf]
        %v913 = vld [vmem:[%s4 + $0x9c] sm:$0xf]
        %v914 = vld [vmem:[%s3] sm:$0xf]
        %v915 = vld [vmem:[%s3 + $0x4] sm:$0xf]
        %v916 = vld [vmem:[%s3 + $0x8] sm:$0xf]
        %v917 = vld [vmem:[%s3 + $0xc] sm:$0xf]
        %v918 = vld [vmem:[%s3 + $0x10] sm:$0xf]
        %v919 = vld [vmem:[%s3 + $0x14] sm:$0xf]
        %v920 = vld [vmem:[%s3 + $0x18] sm:$0xf]
        %v921 = vld [vmem:[%s3 + $0x1c] sm:$0xf]
        %v922 = vld [vmem:[%s3 + $0x20] sm:$0xf]
        %v923 = vld [vmem:[%s3 + $0x24] sm:$0xf]
        %v924 = vld [vmem:[%s3 + $0x28] sm:$0xf]
        %v925 = vld [vmem:[%s3 + $0x2c] sm:$0xf]
        %v926 = vld [vmem:[%s3 + $0x30] sm:$0xf]
        %v927 = vld [vmem:[%s3 + $0x34] sm:$0xf]
        %v928 = vld [vmem:[%s3 + $0x38] sm:$0xf]
        %v929 = vld [vmem:[%s3 + $0x3c] sm:$0xf]
        %v946 = vunpack.c.l.b16 %v914
        %v947 = vunpack.c.l.b16 %v915
        %v948 = vunpack.c.l.b16 %v916
        %v949 = vunpack.c.l.b16 %v917
        %v950 = vunpack.c.l.b16 %v918
        %v951 = vunpack.c.l.b16 %v919
        %v952 = vunpack.c.l.b16 %v920
        %v953 = vunpack.c.l.b16 %v921
        %v954 = vunpack.c.l.b16 %v922
        %v955 = vunpack.c.l.b16 %v923
        %v956 = vunpack.c.l.b16 %v924
        %v957 = vunpack.c.l.b16 %v925
        %v958 = vunpack.c.l.b16 %v926
        %v959 = vunpack.c.l.b16 %v927
        %v960 = vunpack.c.l.b16 %v928
        %v961 = vunpack.c.l.b16 %v929
        %v962 = vpack.c.b16 %v947, %v946
        %v963 = vpack.c.b16 %v949, %v948
        %v964 = vpack.c.b16 %v951, %v950
        %v965 = vpack.c.b16 %v953, %v952
        %v966 = vpack.c.b16 %v955, %v954
        %v967 = vpack.c.b16 %v957, %v956
        %v968 = vpack.c.b16 %v959, %v958
        %v969 = vpack.c.b16 %v961, %v960
        %978 = vmatprep.subr.bf16.mxu0 0
        %979 = vmatpush1.bf16.msra.mxu0 %v969
        %980 = vmatprep.subr.bf16.mxu0 0
        %981 = vmatpush1.bf16.msra.mxu0 %v968
        %982 = vmatprep.subr.bf16.mxu0 0
        %983 = vmatpush1.bf16.msra.mxu0 %v967
        %984 = vmatprep.subr.bf16.mxu0 0
        %985 = vmatpush1.bf16.msra.mxu0 %v966
        %986 = vmatprep.subr.bf16.mxu0 0
        %987 = vmatpush1.bf16.msra.mxu0 %v965
        %988 = vmatprep.subr.bf16.mxu0 0
        %989 = vmatpush1.bf16.msra.mxu0 %v964
        %990 = vmatprep.subr.bf16.mxu0 0
        %991 = vmatpush1.bf16.msra.mxu0 %v963
        %992 = vmatprep.subr.bf16.mxu0 0
        %993 = vmatpush1.bf16.msra.mxu0 %v962
        %994 = vmatprep.subr.bf16.mxu0 0
        %995 = vmatpush2.bf16.msra.mxu0 0
        %996 = vmatprep.subr.bf16.mxu0 0
        %997 = vmatpush2.bf16.msra.mxu0 0
        %998 = vmatprep.subr.bf16.mxu0 0
        %999 = vmatpush2.bf16.msra.mxu0 0
        %1000 = vmatprep.subr.bf16.mxu0 0
        %1001 = vmatpush2.bf16.msra.mxu0 0
        %1002 = vmatprep.subr.bf16.mxu0 0
        %1003 = vmatpush2.bf16.msra.mxu0 0
        %1004 = vmatprep.subr.bf16.mxu0 0
        %1005 = vmatpush2.bf16.msra.mxu0 0
        %1006 = vmatprep.subr.bf16.mxu0 0
        %1007 = vmatpush2.bf16.msra.mxu0 0
        %1008 = vmatprep.subr.bf16.mxu0 0
        %1009 = vmatpush2.bf16.msra.mxu0 0
        %1010 = vmatprep.mubr.bf16.mxu0 0
        %1011 = vmatmul.mubr.bf16.gmra.mxu0 %v318
        %v1012 = vpop.f32.mrf.mxu0
        %v1013 = vadd.f32 0.0, %v1012
        %v1014 = vpop.f32.mrf.mxu0
        %v1015 = vpop.f32.mrf.mxu0
        %v1016 = vadd.f32 0.0, %v1015
        %v1017 = vpop.f32.mrf.mxu0
        %1018 = vmatprep.mubr.bf16.mxu0 0
        %1019 = vmatmul.mubr.bf16.gmra.mxu0 %v319
        %v1020 = vpop.f32.mrf.mxu0
        %v1021 = vadd.f32 0.0, %v1020
        %v1022 = vpop.f32.mrf.mxu0
        %v1023 = vpop.f32.mrf.mxu0
        %v1024 = vadd.f32 0.0, %v1023
        %v1025 = vpop.f32.mrf.mxu0
        %1026 = vdwg.mxu0
        %v1067 = vunpack.c.l.b16 %v874
        %v1068 = vunpack.c.l.b16 %v875
        %v1069 = vunpack.c.l.b16 %v876
        %v1070 = vunpack.c.l.b16 %v877
        %v1071 = vunpack.c.l.b16 %v878
        %v1072 = vunpack.c.l.b16 %v879
        %v1073 = vunpack.c.l.b16 %v880
        %v1074 = vunpack.c.l.b16 %v881
        %v1075 = vunpack.c.l.b16 %v882
        %v1076 = vunpack.c.l.b16 %v883
        %v1077 = vunpack.c.l.b16 %v884
        %v1078 = vunpack.c.l.b16 %v885
        %v1079 = vunpack.c.l.b16 %v886
        %v1080 = vunpack.c.l.b16 %v887
        %v1081 = vunpack.c.l.b16 %v888
        %v1082 = vunpack.c.l.b16 %v889
        %v1083 = vunpack.c.l.b16 %v890
        %v1084 = vunpack.c.l.b16 %v891
        %v1085 = vunpack.c.l.b16 %v892
        %v1086 = vunpack.c.l.b16 %v893
        %v1087 = vunpack.c.l.b16 %v894
        %v1088 = vunpack.c.l.b16 %v895
        %v1089 = vunpack.c.l.b16 %v896
        %v1090 = vunpack.c.l.b16 %v897
        %v1091 = vunpack.c.l.b16 %v898
        %v1092 = vunpack.c.l.b16 %v899
        %v1093 = vunpack.c.l.b16 %v900
        %v1094 = vunpack.c.l.b16 %v901
        %v1095 = vunpack.c.l.b16 %v902
        %v1096 = vunpack.c.l.b16 %v903
        %v1097 = vunpack.c.l.b16 %v904
        %v1098 = vunpack.c.l.b16 %v905
        %v1099 = vunpack.c.l.b16 %v906
        %v1100 = vunpack.c.l.b16 %v907
        %v1101 = vunpack.c.l.b16 %v908
        %v1102 = vunpack.c.l.b16 %v909
        %v1103 = vunpack.c.l.b16 %v910
        %v1104 = vunpack.c.l.b16 %v911
        %v1105 = vunpack.c.l.b16 %v912
        %v1106 = vunpack.c.l.b16 %v913
        %v1107 = vpack.c.b16 %v1068, %v1067
        %v1108 = vpack.c.b16 %v1070, %v1069
        %v1109 = vpack.c.b16 %v1072, %v1071
        %v1110 = vpack.c.b16 %v1074, %v1073
        %v1111 = vpack.c.b16 %v1076, %v1075
        %v1112 = vpack.c.b16 %v1078, %v1077
        %v1113 = vpack.c.b16 %v1080, %v1079
        %v1114 = vpack.c.b16 %v1082, %v1081
        %v1115 = vpack.c.b16 %v1084, %v1083
        %v1116 = vpack.c.b16 %v1086, %v1085
        %v1117 = vpack.c.b16 %v1088, %v1087
        %v1118 = vpack.c.b16 %v1090, %v1089
        %v1119 = vpack.c.b16 %v1092, %v1091
        %v1120 = vpack.c.b16 %v1094, %v1093
        %v1121 = vpack.c.b16 %v1096, %v1095
        %v1122 = vpack.c.b16 %v1098, %v1097
        %v1123 = vpack.c.b16 %v1100, %v1099
        %v1124 = vpack.c.b16 %v1102, %v1101
        %v1125 = vpack.c.b16 %v1104, %v1103
        %v1126 = vpack.c.b16 %v1106, %v1105
        %vm1147 = vcmask 523264
        %v1149 = vsel %vm1147, %v870, 0
        %v1152 = vsel %vm1147, %v873, 0
        %1154 = vmatprep.subr.bf16.mxu0 0
        %1155 = vmatpush1.bf16.msra.mxu0 %v1114
        %1156 = vmatprep.subr.bf16.mxu0 0
        %1157 = vmatpush1.bf16.msra.mxu0 %v1113
        %1158 = vmatprep.subr.bf16.mxu0 0
        %1159 = vmatpush1.bf16.msra.mxu0 %v1112
        %1160 = vmatprep.subr.bf16.mxu0 0
        %1161 = vmatpush1.bf16.msra.mxu0 %v1111
        %1162 = vmatprep.subr.bf16.mxu0 0
        %1163 = vmatpush1.bf16.msra.mxu0 %v1110
        %1164 = vmatprep.subr.bf16.mxu0 0
        %1165 = vmatpush1.bf16.msra.mxu0 %v1109
        %1166 = vmatprep.subr.bf16.mxu0 0
        %1167 = vmatpush1.bf16.msra.mxu0 %v1108
        %1168 = vmatprep.subr.bf16.mxu0 0
        %1169 = vmatpush1.bf16.msra.mxu0 %v1107
        %1170 = vmatprep.subr.bf16.mxu0 0
        %1171 = vmatpush2.bf16.msra.mxu0 %v1122
        %1172 = vmatprep.subr.bf16.mxu0 0
        %1173 = vmatpush2.bf16.msra.mxu0 %v1121
        %1174 = vmatprep.subr.bf16.mxu0 0
        %1175 = vmatpush2.bf16.msra.mxu0 %v1120
        %1176 = vmatprep.subr.bf16.mxu0 0
        %1177 = vmatpush2.bf16.msra.mxu0 %v1119
        %1178 = vmatprep.subr.bf16.mxu0 0
        %1179 = vmatpush2.bf16.msra.mxu0 %v1118
        %1180 = vmatprep.subr.bf16.mxu0 0
        %1181 = vmatpush2.bf16.msra.mxu0 %v1117
        %1182 = vmatprep.subr.bf16.mxu0 0
        %1183 = vmatpush2.bf16.msra.mxu0 %v1116
        %1184 = vmatprep.subr.bf16.mxu0 0
        %1185 = vmatpush2.bf16.msra.mxu0 %v1115
        %1186 = vmatprep.mubr.bf16.mxu0 %v869
        %1187 = vmatmul.mubr.bf16.gmra.mxu0 %v868
        %v1188 = vpop.f32.mrf.mxu0
        %v1189 = vadd.f32 %v1013, %v1188
        %v1190 = vpop.f32.mrf.mxu0
        %v1191 = vpop.f32.mrf.mxu0
        %v1192 = vadd.f32 %v1016, %v1191
        %v1193 = vpop.f32.mrf.mxu0
        %1194 = vmatprep.mubr.bf16.mxu0 %v872
        %1195 = vmatmul.mubr.bf16.gmra.mxu0 %v871
        %v1196 = vpop.f32.mrf.mxu0
        %v1197 = vadd.f32 %v1021, %v1196
        %v1198 = vpop.f32.mrf.mxu0
        %v1199 = vpop.f32.mrf.mxu0
        %v1200 = vadd.f32 %v1024, %v1199
        %v1201 = vpop.f32.mrf.mxu0
        %1202 = vdwg.mxu0
        %1203 = vmatprep.subr.bf16.mxu0 0
        %1204 = vmatpush1.bf16.msra.mxu0 0
        %1205 = vmatprep.subr.bf16.mxu0 0
        %1206 = vmatpush1.bf16.msra.mxu0 0
        %1207 = vmatprep.subr.bf16.mxu0 0
        %1208 = vmatpush1.bf16.msra.mxu0 0
        %1209 = vmatprep.subr.bf16.mxu0 0
        %1210 = vmatpush1.bf16.msra.mxu0 0
        %1211 = vmatprep.subr.bf16.mxu0 0
        %1212 = vmatpush1.bf16.msra.mxu0 %v1126
        %1213 = vmatprep.subr.bf16.mxu0 0
        %1214 = vmatpush1.bf16.msra.mxu0 %v1125
        %1215 = vmatprep.subr.bf16.mxu0 0
        %1216 = vmatpush1.bf16.msra.mxu0 %v1124
        %1217 = vmatprep.subr.bf16.mxu0 0
        %1218 = vmatpush1.bf16.msra.mxu0 %v1123
        %1219 = vmatprep.subr.bf16.mxu0 0
        %1220 = vmatpush2.bf16.msra.mxu0 0
        %1221 = vmatprep.subr.bf16.mxu0 0
        %1222 = vmatpush2.bf16.msra.mxu0 0
        %1223 = vmatprep.subr.bf16.mxu0 0
        %1224 = vmatpush2.bf16.msra.mxu0 0
        %1225 = vmatprep.subr.bf16.mxu0 0
        %1226 = vmatpush2.bf16.msra.mxu0 0
        %1227 = vmatprep.subr.bf16.mxu0 0
        %1228 = vmatpush2.bf16.msra.mxu0 0
        %1229 = vmatprep.subr.bf16.mxu0 0
        %1230 = vmatpush2.bf16.msra.mxu0 0
        %1231 = vmatprep.subr.bf16.mxu0 0
        %1232 = vmatpush2.bf16.msra.mxu0 0
        %1233 = vmatprep.subr.bf16.mxu0 0
        %1234 = vmatpush2.bf16.msra.mxu0 0
        %1235 = vmatprep.mubr.bf16.mxu0 0
        %1236 = vmatmul.mubr.bf16.gmra.mxu0 %v1149
        %v1237 = vpop.f32.mrf.mxu0
        %v1238 = vadd.f32 %v1189, %v1237
        %v1239 = vpop.f32.mrf.mxu0
        %v1240 = vpop.f32.mrf.mxu0
        %v1241 = vadd.f32 %v1192, %v1240
        %v1242 = vpop.f32.mrf.mxu0
        %1243 = vmatprep.mubr.bf16.mxu0 0
        %1244 = vmatmul.mubr.bf16.gmra.mxu0 %v1152
        %v1245 = vpop.f32.mrf.mxu0
        %v1246 = vadd.f32 %v1197, %v1245
        %v1247 = vpop.f32.mrf.mxu0
        %v1248 = vpop.f32.mrf.mxu0
        %v1249 = vadd.f32 %v1200, %v1248
        %v1250 = vpop.f32.mrf.mxu0
        %1251 = vdwg.mxu0
        %v1252 = vadd.f32 %v1238, %v226
        %v1253 = vadd.f32 %v1241, %v227
        %v1254 = vadd.f32 %v1246, %v228
        %v1255 = vadd.f32 %v1249, %v229
        %1256 = vst.msk [vmem:[%s218] sm:$0xff] %vm230, %v1252
        %1258 = vrot.lane.b32.xlu0 %v1253, 32
        %v1259 = vpop.permute.xlu0 %1258
        %vm1261 = vcmask 523520
        %1262 = vst.msk [vmem:[%s218] sm:$0xff] %vm1261, %v1259
        %1264 = vrot.lane.b32.xlu0 %v1254, 64
        %v1265 = vpop.permute.xlu0 %1264
        %vm1267 = vcmask 785920
        %1268 = vst.msk [vmem:[%s218] sm:$0xff] %vm1267, %v1265
        %1270 = vrot.lane.b32.xlu0 %v1255, 96
        %v1271 = vpop.permute.xlu0 %1270
        %vm1273 = vcmask 1048320
        %1274 = vst.msk [vmem:[%s218] sm:$0xff] %vm1273, %v1271
        %s1275 = sand.u32 %s137, 1
        %s1276 = scalar_lea.sflag [#allocation3], %s1275
        %s1277 = sand.u32 %s137, 1
        %s1278 = smul.addr %s1277, 8
        %s1279 = scalar_lea.vmem [#allocation2], %s1278
        // Predicated region
        $region41: #{tpu_custom_call.1} parent=39 // pred_check
          %p1280 = pneg %p147
        $region42: #{tpu_custom_call.1} parent=39 // pred_check_branch
          %1282 = sbr.rel (%p1280) target = $region44
        $region43: #{tpu_custom_call.1} parent=39 // pred_region
          %s1284 = ssub.s32 128, 128
          %1285 = vsyncadd %s1276, %s1284
          %s1286 = smul.addr %s19, 128
          %s1287 = scalar_lea.hbm %s5, %s1286
          %s1289 = sshll.u32 %s1279, 4
          %s1290 = int_to_ptr.vmem [resolvable:$true] %s1289
          %1292 = dma.vmem_to_hbm [thread:$0]  %s1290, 128, %s1287, %s1276
        $region44: #{tpu_custom_call.1} parent=39 // pred_fallthru
          _
      $region40: #{tpu_custom_call.1} parent=5 // pred_fallthru
        _
      %p1293 = scmp.le.s32.totalorder 2, %s14
      // Predicated region
      $region45: #{tpu_custom_call.1} parent=5 // pred_check
        %p1294 = pneg %p1293
      $region46: #{tpu_custom_call.1} parent=5 // pred_check_branch
        %1296 = sbr.rel (%p1294) target = $region48
      $region47: #{tpu_custom_call.1} parent=5 // pred_region
        %s1297 = ssub.s32 %s14, 2
        // Predicated region
        $region49: #{tpu_custom_call.1} parent=47 // pred_check
          %p1298 = pneg %p153
        $region50: #{tpu_custom_call.1} parent=47 // pred_check_branch
          %1300 = sbr.rel (%p1298) target = $region52
        $region51: #{tpu_custom_call.1} parent=47 // pred_region
          %s1301 = sand.u32 %s138, 1
          %s1302 = scalar_lea.sflag [#allocation3], %s1301
          %s1303 = sand.u32 %s138, 1
          %s1304 = smul.addr %s1303, 8
          %s1305 = scalar_lea.vmem [#allocation2], %s1304
          %1306 = dma.done %s1302, 128
        $region52: #{tpu_custom_call.1} parent=47 // pred_fallthru
          _
      $region48: #{tpu_custom_call.1} parent=5 // pred_fallthru
        _
    $region6: #{tpu_custom_call.1} parent=1 // loop_footer
      %s18 = sadd.s32 1, %s14
    $region7: #{tpu_custom_call.1} parent=1 // loop_footer_branch
      %13 = sbr.rel target = $region3
    $region8: #{tpu_custom_call.1} parent=1 // loop_exit
      _
    %1307 = vsyncpa [#allocation3], 1
    %s1308 = scalar_lea.sflag [#allocation3], 1
    %1309 = vsyncpa %s1308, 1

</llo_original>
